<compile_context>
chip_gen: v5e
topology: v5e:2x2
jax: 0.10.0
libtpu: 0.0.40
codegen_flags: <defaults>
</compile_context>

<pallas_src>
import jax
import jax.numpy as jnp
from jax.experimental import pallas as pl
from jax.experimental.pallas import tpu as pltpu

HIDDEN = 256
BLOCK_B = 128  # batch rows per grid step -> 2*BLOCK_B = 256 stacked rows (one MXU M-tile on v6e/v7x)


def _twin_critic_kernel(
    x_ref,    # (TB, d_in)  f32   [state | action]
    w1_ref,   # (d_in, 512) bf16  [w1_c1 | w1_c2]
    b1_ref,   # (1, 512)    f32   [b1_c1 | b1_c2]
    w2_ref,   # (256, 512)  bf16  [w2_c1 | w2_c2]
    b2_ref,   # (1, 512)    f32   [b2_c1 | b2_c2]
    w3_ref,   # (2, 256)    f32   row 0 = w3_c1, row 1 = w3_c2
    b3_ref,   # (2, 1)      f32
    out_ref,  # (2, TB, 1)  f32   [q1 ; q2]
):
    tb = x_ref.shape[0]

    # ---- layer 1: both critics fused along lanes, single bf16 MXU dot -------
    x = x_ref[...].astype(jnp.bfloat16)
    y = jnp.dot(x, w1_ref[...], preferred_element_type=jnp.float32) + b1_ref[...]
    y = jnp.maximum(y, 0.0)                                     # (TB, 512) f32

    # Sublane-stack the two critics' hiddens: rows [0:TB] = c1, [TB:2TB] = c2.
    h = jnp.concatenate([y[:, :HIDDEN], y[:, HIDDEN:]], axis=0)  # (2TB, 256)

    # ---- layer 2: ONE bf16 dot against [w2_1 | w2_2]; keep block diagonal ----
    z = (
        jnp.dot(h.astype(jnp.bfloat16), w2_ref[...],
                preferred_element_type=jnp.float32)
        + b2_ref[...]
    )                                                            # (2TB, 512)
    g = jnp.maximum(
        jnp.concatenate([z[:tb, :HIDDEN], z[tb:, HIDDEN:]], axis=0), 0.0
    )                                                            # (2TB, 256)

    # ---- layer 3: N=1 heads on VPU/XLU (broadcast-mul + row reduce) ---------
    g3 = g.reshape(2, tb, HIDDEN)                                # (2, TB, 256)
    q = jnp.sum(g3 * w3_ref[...][:, None, :], axis=-1, keepdims=True)  # (2, TB, 1)
    out_ref[...] = q + b3_ref[...][:, :, None]


def twin_critic_forward(state, action, params, block_b=BLOCK_B):
    """Returns (q1, q2), each (B, 1) float32."""
    B = state.shape[0]
    x = jnp.concatenate([state, action], axis=1).astype(jnp.float32)
    d_in = x.shape[1]

    if B <= block_b:
        bb, Bp = B, B            # single full-extent block (no divisibility constraint)
    else:
        bb = block_b
        Bp = pl.cdiv(B, bb) * bb
        if Bp != B:
            x = jnp.pad(x, ((0, Bp - B), (0, 0)))
    grid = (Bp // bb,)

    def resident(arr):
        nd = arr.ndim
        return pl.BlockSpec(arr.shape, lambda i, _nd=nd: (0,) * _nd)

    w1, b1 = params["w1"], params["b1"]
    w2, b2 = params["w2"], params["b2"]
    w3, b3 = params["w3"], params["b3"]

    out = pl.pallas_call(
        _twin_critic_kernel,
        out_shape=jax.ShapeDtypeStruct((2, Bp, 1), jnp.float32),
        grid=grid,
        in_specs=[
            pl.BlockSpec((bb, d_in), lambda i: (i, 0)),   # batch-tiled input
            resident(w1), resident(b1),                   # weights stay VMEM-resident
            resident(w2), resident(b2),
            resident(w3), resident(b3),
        ],
        out_specs=pl.BlockSpec((2, bb, 1), lambda i: (0, i, 0)),
        compiler_params=pltpu.CompilerParams(
            dimension_semantics=("parallel",),            # v7x: shard batch over 2 TCs
        ),
    )(x, w1, b1, w2, b2, w3, b3)

    return out[0, :B, :], out[1, :B, :]


def init_params(key, state_dim, action_dim):
    """PyTorch-nn.Linear-style init (uniform +/- 1/sqrt(fan_in)), packed into the
    layout the kernel consumes. Returns (packed_params, raw_f32_params)."""
    d_in = state_dim + action_dim

    def linear(key, fan_in, fan_out):
        kw, kb = jax.random.split(key)
        bound = 1.0 / (fan_in ** 0.5)
        w = jax.random.uniform(kw, (fan_in, fan_out), jnp.float32, -bound, bound)
        b = jax.random.uniform(kb, (1, fan_out), jnp.float32, -bound, bound)
        return w, b

    keys = jax.random.split(key, 6)
    w1_1, b1_1 = linear(keys[0], d_in, HIDDEN)
    w2_1, b2_1 = linear(keys[1], HIDDEN, HIDDEN)
    w3_1, b3_1 = linear(keys[2], HIDDEN, 1)
    w1_2, b1_2 = linear(keys[3], d_in, HIDDEN)
    w2_2, b2_2 = linear(keys[4], HIDDEN, HIDDEN)
    w3_2, b3_2 = linear(keys[5], HIDDEN, 1)

    packed = dict(
        w1=jnp.concatenate([w1_1, w1_2], axis=1).astype(jnp.bfloat16),  # (d_in, 512)
        b1=jnp.concatenate([b1_1, b1_2], axis=1),                       # (1, 512) f32
        w2=jnp.concatenate([w2_1, w2_2], axis=1).astype(jnp.bfloat16),  # (256, 512)
        b2=jnp.concatenate([b2_1, b2_2], axis=1),                       # (1, 512) f32
        w3=jnp.stack([w3_1[:, 0], w3_2[:, 0]], axis=0),                 # (2, 256) f32
        b3=jnp.stack([b3_1[:, 0], b3_2[:, 0]], axis=0),                 # (2, 1)   f32
    )
    raw = dict(w1_1=w1_1, b1_1=b1_1, w2_1=w2_1, b2_1=b2_1, w3_1=w3_1, b3_1=b3_1,
               w1_2=w1_2, b1_2=b1_2, w2_2=w2_2, b2_2=b2_2, w3_2=w3_2, b3_2=b3_2)
    return packed, raw


def twin_critic_ref_bf16(state, action, p):
    """Pure-JAX reference mirroring the kernel's bf16/f32 placement exactly."""
    x = jnp.concatenate([state, action], axis=1).astype(jnp.bfloat16)
    y = jax.nn.relu(jnp.dot(x, p["w1"], preferred_element_type=jnp.float32) + p["b1"])
    h1, h2 = y[:, :HIDDEN], y[:, HIDDEN:]
    g1 = jax.nn.relu(jnp.dot(h1.astype(jnp.bfloat16), p["w2"][:, :HIDDEN],
                             preferred_element_type=jnp.float32) + p["b2"][:, :HIDDEN])
    g2 = jax.nn.relu(jnp.dot(h2.astype(jnp.bfloat16), p["w2"][:, HIDDEN:],
                             preferred_element_type=jnp.float32) + p["b2"][:, HIDDEN:])
    q1 = jnp.sum(g1 * p["w3"][0:1], axis=-1, keepdims=True) + p["b3"][0, 0]
    q2 = jnp.sum(g2 * p["w3"][1:2], axis=-1, keepdims=True) + p["b3"][1, 0]
    return q1, q2


def twin_critic_ref_f32(state, action, raw):
    """Full-f32 reference of the original PyTorch forward (tracks bf16 quant error)."""
    x = jnp.concatenate([state, action], axis=1)

    def critic(w1, b1, w2, b2, w3, b3):
        h = jax.nn.relu(x @ w1 + b1)
        h = jax.nn.relu(h @ w2 + b2)
        return h @ w3 + b3

    q1 = critic(raw["w1_1"], raw["b1_1"], raw["w2_1"], raw["b2_1"], raw["w3_1"], raw["b3_1"])
    q2 = critic(raw["w1_2"], raw["b1_2"], raw["w2_2"], raw["b2_2"], raw["w3_2"], raw["b3_2"])
    return q1, q2


if __name__ == "__main__":
    state_dim, action_dim = 12, 4

    key = jax.random.PRNGKey(0)
    k_params, k_state, k_action = jax.random.split(key, 3)
    params, raw = init_params(k_params, state_dim, action_dim)

    # --- small-batch check (single resident block) ---------------------------
    batch = 8
    state = jax.random.normal(k_state, (batch, state_dim), jnp.float32)
    action = jax.random.normal(k_action, (batch, action_dim), jnp.float32)

    q1, q2 = twin_critic_forward(state, action, params)
    q1 = jax.block_until_ready(q1)
    q2 = jax.block_until_ready(q2)
    assert q1.shape == (batch, 1) and q2.shape == (batch, 1)

    r1, r2 = twin_critic_ref_bf16(state, action, params)
    assert jnp.allclose(q1, r1, atol=2e-3, rtol=2e-3)
    assert jnp.allclose(q2, r2, atol=2e-3, rtol=2e-3)

    f1, f2 = twin_critic_ref_f32(state, action, raw)
    assert jnp.allclose(q1, f1, atol=5e-2, rtol=5e-2)   # bf16 quantization budget
    assert jnp.allclose(q2, f2, atol=5e-2, rtol=5e-2)

    # --- larger-batch check (exercises batch grid + padding path) ------------
    batch2 = 320
    ks2, ka2 = jax.random.split(jax.random.PRNGKey(1))
    state2 = jax.random.normal(ks2, (batch2, state_dim), jnp.float32)
    action2 = jax.random.normal(ka2, (batch2, action_dim), jnp.float32)

    p1, p2 = twin_critic_forward(state2, action2, params)
    p1 = jax.block_until_ready(p1)
    p2 = jax.block_until_ready(p2)
    s1, s2 = twin_critic_ref_bf16(state2, action2, params)
    assert p1.shape == (batch2, 1) and p2.shape == (batch2, 1)
    assert jnp.allclose(p1, s1, atol=2e-3, rtol=2e-3)
    assert jnp.allclose(p2, s2, atol=2e-3, rtol=2e-3)

    print("KERNEL_OK")
</pallas_src>

<mosaic_0001>
module attributes {stable_mosaic.version = 11 : i64} {
  func.func @_twin_critic_kernel(%arg0: i32, %arg1: memref<8x16xf32, #tpu.memory_space<vmem>>, %arg2: memref<16x512xbf16, #tpu.memory_space<vmem>>, %arg3: memref<1x512xf32, #tpu.memory_space<vmem>>, %arg4: memref<256x512xbf16, #tpu.memory_space<vmem>>, %arg5: memref<1x512xf32, #tpu.memory_space<vmem>>, %arg6: memref<2x256xf32, #tpu.memory_space<vmem>>, %arg7: memref<2x1xf32, #tpu.memory_space<vmem>>, %arg8: memref<2x8x1xf32, #tpu.memory_space<vmem>>) attributes {dimension_semantics = [#tpu.dimension_semantics<parallel>], iteration_bounds = array<i64: 1>, scalar_prefetch = 0 : i64, scratch_operands = 0 : i64, tpu.core_type = #tpu.core_type<tc>, window_params = [{transform_indices = @transform_0, window_bounds = array<i64: 8, 16>}, {pipeline_mode = #tpu.pipeline_mode<synchronous>, transform_indices = @transform_1, window_bounds = array<i64: 16, 512>}, {pipeline_mode = #tpu.pipeline_mode<synchronous>, transform_indices = @transform_2, window_bounds = array<i64: 1, 512>}, {pipeline_mode = #tpu.pipeline_mode<synchronous>, transform_indices = @transform_3, window_bounds = array<i64: 256, 512>}, {pipeline_mode = #tpu.pipeline_mode<synchronous>, transform_indices = @transform_4, window_bounds = array<i64: 1, 512>}, {pipeline_mode = #tpu.pipeline_mode<synchronous>, transform_indices = @transform_5, window_bounds = array<i64: 2, 256>}, {pipeline_mode = #tpu.pipeline_mode<synchronous>, transform_indices = @transform_6, window_bounds = array<i64: 2, 1>}, {transform_indices = @transform_7, window_bounds = array<i64: 2, 8, 1>}]} {
    %c0 = arith.constant 0 : index
    %c0_0 = arith.constant 0 : index
    %0 = vector.load %arg1[%c0, %c0_0] : memref<8x16xf32, #tpu.memory_space<vmem>>, vector<8x16xf32>
    %1 = arith.truncf %0 : vector<8x16xf32> to vector<8x16xbf16>
    %c0_1 = arith.constant 0 : index
    %c0_2 = arith.constant 0 : index
    %2 = vector.load %arg2[%c0_1, %c0_2] : memref<16x512xbf16, #tpu.memory_space<vmem>>, vector<16x512xbf16>
    %cst = arith.constant dense<0.000000e+00> : vector<8x512xf32>
    %3 = tpu.matmul %1, %2, %cst {dimension_numbers = #tpu.dot_dimension_numbers<[1], [0], [0], [1], [0, 0, 1, 1], [], []>} : vector<8x16xbf16>, vector<16x512xbf16>, vector<8x512xf32> -> vector<8x512xf32>
    %c0_3 = arith.constant 0 : index
    %c0_4 = arith.constant 0 : index
    %4 = vector.load %arg3[%c0_3, %c0_4] : memref<1x512xf32, #tpu.memory_space<vmem>>, vector<1x512xf32>
    %5 = vector.broadcast %4 : vector<1x512xf32> to vector<8x512xf32>
    %6 = arith.addf %3, %5 : vector<8x512xf32>
    %cst_5 = arith.constant 0.000000e+00 : f32
    %7 = vector.broadcast %cst_5 : f32 to vector<8x512xf32>
    %8 = arith.maximumf %6, %7 : vector<8x512xf32>
    %9 = vector.extract_strided_slice %8 {offsets = [0, 0], sizes = [8, 256], strides = [1, 1]} : vector<8x512xf32> to vector<8x256xf32>
    %10 = vector.extract_strided_slice %8 {offsets = [0, 256], sizes = [8, 256], strides = [1, 1]} : vector<8x512xf32> to vector<8x256xf32>
    %11 = tpu.concatenate %9, %10 in 0 : vector<8x256xf32>, vector<8x256xf32> -> vector<16x256xf32>
    %12 = arith.truncf %11 : vector<16x256xf32> to vector<16x256xbf16>
    %c0_6 = arith.constant 0 : index
    %c0_7 = arith.constant 0 : index
    %13 = vector.load %arg4[%c0_6, %c0_7] : memref<256x512xbf16, #tpu.memory_space<vmem>>, vector<256x512xbf16>
    %cst_8 = arith.constant dense<0.000000e+00> : vector<16x512xf32>
    %14 = tpu.matmul %12, %13, %cst_8 {dimension_numbers = #tpu.dot_dimension_numbers<[1], [0], [0], [1], [0, 0, 1, 1], [], []>} : vector<16x256xbf16>, vector<256x512xbf16>, vector<16x512xf32> -> vector<16x512xf32>
    %c0_9 = arith.constant 0 : index
    %c0_10 = arith.constant 0 : index
    %15 = vector.load %arg5[%c0_9, %c0_10] : memref<1x512xf32, #tpu.memory_space<vmem>>, vector<1x512xf32>
    %16 = vector.broadcast %15 : vector<1x512xf32> to vector<16x512xf32>
    %17 = arith.addf %14, %16 : vector<16x512xf32>
    %18 = vector.extract_strided_slice %17 {offsets = [0, 0], sizes = [8, 256], strides = [1, 1]} : vector<16x512xf32> to vector<8x256xf32>
    %19 = vector.extract_strided_slice %17 {offsets = [8, 256], sizes = [8, 256], strides = [1, 1]} : vector<16x512xf32> to vector<8x256xf32>
    %20 = tpu.concatenate %18, %19 in 0 : vector<8x256xf32>, vector<8x256xf32> -> vector<16x256xf32>
    %cst_11 = arith.constant 0.000000e+00 : f32
    %21 = vector.broadcast %cst_11 : f32 to vector<16x256xf32>
    %22 = arith.maximumf %20, %21 : vector<16x256xf32>
    %23 = vector.shape_cast %22 : vector<16x256xf32> to vector<2x8x256xf32>
    %c0_12 = arith.constant 0 : index
    %c0_13 = arith.constant 0 : index
    %24 = vector.load %arg6[%c0_12, %c0_13] : memref<2x256xf32, #tpu.memory_space<vmem>>, vector<2x256xf32>
    %25 = vector.shape_cast %24 : vector<2x256xf32> to vector<2x1x256xf32>
    %26 = vector.broadcast %25 : vector<2x1x256xf32> to vector<2x8x256xf32>
    %27 = arith.mulf %23, %26 : vector<2x8x256xf32>
    %cst_14 = arith.constant dense<0.000000e+00> : vector<2x8xf32>
    %28 = vector.multi_reduction <add>, %27, %cst_14 [2] : vector<2x8x256xf32> to vector<2x8xf32>
    %29 = vector.shape_cast %28 : vector<2x8xf32> to vector<2x8x1xf32>
    %c0_15 = arith.constant 0 : index
    %c0_16 = arith.constant 0 : index
    %30 = vector.load %arg7[%c0_15, %c0_16] : memref<2x1xf32, #tpu.memory_space<vmem>>, vector<2x1xf32>
    %31 = vector.shape_cast %30 : vector<2x1xf32> to vector<2x1x1xf32>
    %32 = vector.broadcast %31 : vector<2x1x1xf32> to vector<2x8x1xf32>
    %33 = arith.addf %29, %32 : vector<2x8x1xf32>
    %c0_17 = arith.constant 0 : index
    %c0_18 = arith.constant 0 : index
    %c0_19 = arith.constant 0 : index
    %34 = vector.load %arg8[%c0_17, %c0_18, %c0_19] : memref<2x8x1xf32, #tpu.memory_space<vmem>>, vector<2x8x1xf32>
    tpu.vector_store %arg8[%c0_17, %c0_18, %c0_19], %33 {strides = array<i32>} : memref<2x8x1xf32, #tpu.memory_space<vmem>>, vector<2x8x1xf32>,
    return
  }
  func.func @transform_0(%arg0: i32) -> (i32, i32) {
    %c0_i32 = arith.constant 0 : i32
    %c0_i32_0 = arith.constant 0 : i32
    return %arg0, %c0_i32 : i32, i32
  }
  func.func @transform_1(%arg0: i32) -> (i32, i32) {
    %c0_i32 = arith.constant 0 : i32
    %c0_i32_0 = arith.constant 0 : i32
    %c0_i32_1 = arith.constant 0 : i32
    return %c0_i32, %c0_i32_0 : i32, i32
  }
  func.func @transform_2(%arg0: i32) -> (i32, i32) {
    %c0_i32 = arith.constant 0 : i32
    %c0_i32_0 = arith.constant 0 : i32
    %c0_i32_1 = arith.constant 0 : i32
    return %c0_i32, %c0_i32_0 : i32, i32
  }
  func.func @transform_3(%arg0: i32) -> (i32, i32) {
    %c0_i32 = arith.constant 0 : i32
    %c0_i32_0 = arith.constant 0 : i32
    %c0_i32_1 = arith.constant 0 : i32
    return %c0_i32, %c0_i32_0 : i32, i32
  }
  func.func @transform_4(%arg0: i32) -> (i32, i32) {
    %c0_i32 = arith.constant 0 : i32
    %c0_i32_0 = arith.constant 0 : i32
    %c0_i32_1 = arith.constant 0 : i32
    return %c0_i32, %c0_i32_0 : i32, i32
  }
  func.func @transform_5(%arg0: i32) -> (i32, i32) {
    %c0_i32 = arith.constant 0 : i32
    %c0_i32_0 = arith.constant 0 : i32
    %c0_i32_1 = arith.constant 0 : i32
    return %c0_i32, %c0_i32_0 : i32, i32
  }
  func.func @transform_6(%arg0: i32) -> (i32, i32) {
    %c0_i32 = arith.constant 0 : i32
    %c0_i32_0 = arith.constant 0 : i32
    %c0_i32_1 = arith.constant 0 : i32
    return %c0_i32, %c0_i32_0 : i32, i32
  }
  func.func @transform_7(%arg0: i32) -> (i32, i32, i32) {
    %c0_i32 = arith.constant 0 : i32
    %c0_i32_0 = arith.constant 0 : i32
    %c0_i32_1 = arith.constant 0 : i32
    return %c0_i32, %arg0, %c0_i32_0 : i32, i32, i32
  }
}

</mosaic_0001>

<llo_original>
// kernel: tpu_custom_call.1
$region0: #{tpu_custom_call.1}
  #allocation0 [shape = 'u32[]', space=smem, size = 0x4, offset = 0x4, fixed_abs, tag = 'smem constant byte address 0x4 - core index']
  #allocation1 [shape = 'u32[72,128]{1,0:T(1,128)}', space=vmem, size = 0x9000, scoped, tag = 'internal scratch']
  %s0 = inlined_call_operand.hbm [shape: f32[8,16], index: 0, kind: input, shape index: {}]
  %s1 = inlined_call_operand.hbm [shape: bf16[16,512], index: 1, kind: input, shape index: {}]
  %s2 = inlined_call_operand.hbm [shape: f32[1,512], index: 2, kind: input, shape index: {}]
  %s3 = inlined_call_operand.hbm [shape: bf16[256,512], index: 3, kind: input, shape index: {}]
  %s4 = inlined_call_operand.hbm [shape: f32[1,512], index: 4, kind: input, shape index: {}]
  %s5 = inlined_call_operand.hbm [shape: f32[2,256], index: 5, kind: input, shape index: {}]
  %s6 = inlined_call_operand.vmem [shape: f32[2,1], index: 6, kind: input, shape index: {}]
  %s7 = inlined_call_operand.vmem [shape: f32[2,8,1], index: 7, kind: output, shape index: {}]
  %s8 = sld [smem:[#allocation0]]
  $region62: #{tpu_custom_call.1} parent=0
    _
  %s10 = ssub.s32 1, %s8
  %s11 = scalar_select 0, %s10, %s8
  $region1: #{tpu_custom_call.1} parent=0
    #allocation2 [shape = 'u8[4096]{0}', space=vmem, size = 0x1000, scoped, tag = 'input window, operand 0, single buffered']
    #allocation3 [shape = 's32[1]{0}', space=sflag, size = 0x4, scoped, tag = 'scoped memory for tpu_custom_call.1']
    #allocation4 [shape = 'u8[16384]{0}', space=vmem, size = 0x4000, scoped, tag = 'input window, operand 1, single buffered']
    #allocation5 [shape = 's32[1]{0}', space=sflag, size = 0x4, scoped, tag = 'scoped memory for tpu_custom_call.1']
    #allocation6 [shape = 'u8[2048]{0}', space=vmem, size = 0x800, scoped, tag = 'input window, operand 2, single buffered']
    #allocation7 [shape = 'u8[262144]{0}', space=vmem, size = 0x40000, scoped, tag = 'input window, operand 3, single buffered']
    #allocation8 [shape = 's32[1]{0}', space=sflag, size = 0x4, scoped, tag = 'scoped memory for tpu_custom_call.1']
    #allocation9 [shape = 'u8[2048]{0}', space=vmem, size = 0x800, scoped, tag = 'input window, operand 4, single buffered']
    #allocation10 [shape = 'u8[2048]{0}', space=vmem, size = 0x800, scoped, tag = 'input window, operand 5, single buffered']
    #allocation11 [shape = 's32[1]{0}', space=sflag, size = 0x4, scoped, tag = 'scoped memory for tpu_custom_call.1']
    %12 = vsyncpa [#allocation3], 0
    %13 = vsyncpa [#allocation5], 0
    %14 = vsyncpa [#allocation8], 0
    %15 = vsyncpa [#allocation11], 0
    // Predicated region
    $region2: #{tpu_custom_call.1} parent=1 // pred_check
      _
    $region3: #{tpu_custom_call.1} parent=1 // pred_check_branch
      %17 = sbr.rel (0) target = $region5
    $region4: #{tpu_custom_call.1} parent=1 // pred_region
      %19 = vsyncadd [#allocation3], 0
      %s21 = sshll.u32 %s0, 4
      %s22 = int_to_ptr.hbm [resolvable:$true] %s21
      %s23 = sshll.u32 [#allocation2], 4
      %s24 = int_to_ptr.vmem [resolvable:$true] %s23
      %26 = dma.hbm_to_vmem [thread:$0]  %s22, 128, %s24, [#allocation3]
    $region5: #{tpu_custom_call.1} parent=1 // pred_fallthru
      _
    // Predicated region
    $region6: #{tpu_custom_call.1} parent=1 // pred_check
      _
    $region7: #{tpu_custom_call.1} parent=1 // pred_check_branch
      %28 = sbr.rel (0) target = $region9
    $region8: #{tpu_custom_call.1} parent=1 // pred_region
      %30 = vsyncadd [#allocation5], 0
      %s31 = sshll.u32 %s1, 4
      %s32 = int_to_ptr.hbm [resolvable:$true] %s31
      %s33 = sshll.u32 [#allocation4], 4
      %s34 = int_to_ptr.vmem [resolvable:$true] %s33
      %39 = dma.hbm_to_vmem [thread:$0]  %s32, 512, %s34, [#allocation5], 256, 256, 16
    $region9: #{tpu_custom_call.1} parent=1 // pred_fallthru
      _
    // Predicated region
    $region10: #{tpu_custom_call.1} parent=1 // pred_check
      _
    $region11: #{tpu_custom_call.1} parent=1 // pred_check_branch
      %41 = sbr.rel (0) target = $region13
    $region12: #{tpu_custom_call.1} parent=1 // pred_region
      %43 = vsyncadd [#allocation5], 0
      %s45 = sshll.u32 %s2, 4
      %s46 = int_to_ptr.hbm [resolvable:$true] %s45
      %s47 = sshll.u32 [#allocation6], 4
      %s48 = int_to_ptr.vmem [resolvable:$true] %s47
      %50 = dma.hbm_to_vmem [thread:$0]  %s46, 64, %s48, [#allocation5]
    $region13: #{tpu_custom_call.1} parent=1 // pred_fallthru
      _
    // Predicated region
    $region14: #{tpu_custom_call.1} parent=1 // pred_check
      _
    $region15: #{tpu_custom_call.1} parent=1 // pred_check_branch
      %52 = sbr.rel (0) target = $region17
    $region16: #{tpu_custom_call.1} parent=1 // pred_region
      %54 = vsyncadd [#allocation8], 0
      %s55 = sshll.u32 %s3, 4
      %s56 = int_to_ptr.hbm [resolvable:$true] %s55
      %s57 = sshll.u32 [#allocation7], 4
      %s58 = int_to_ptr.vmem [resolvable:$true] %s57
      %63 = dma.hbm_to_vmem [thread:$0]  %s56, 8192, %s58, [#allocation8], 256, 256, 16
    $region17: #{tpu_custom_call.1} parent=1 // pred_fallthru
      _
    // Predicated region
    $region18: #{tpu_custom_call.1} parent=1 // pred_check
      _
    $region19: #{tpu_custom_call.1} parent=1 // pred_check_branch
      %65 = sbr.rel (0) target = $region21
    $region20: #{tpu_custom_call.1} parent=1 // pred_region
      %67 = vsyncadd [#allocation8], 0
      %s69 = sshll.u32 %s4, 4
      %s70 = int_to_ptr.hbm [resolvable:$true] %s69
      %s71 = sshll.u32 [#allocation9], 4
      %s72 = int_to_ptr.vmem [resolvable:$true] %s71
      %74 = dma.hbm_to_vmem [thread:$0]  %s70, 64, %s72, [#allocation8]
    $region21: #{tpu_custom_call.1} parent=1 // pred_fallthru
      _
    // Predicated region
    $region22: #{tpu_custom_call.1} parent=1 // pred_check
      _
    $region23: #{tpu_custom_call.1} parent=1 // pred_check_branch
      %76 = sbr.rel (0) target = $region25
    $region24: #{tpu_custom_call.1} parent=1 // pred_region
      %78 = vsyncadd [#allocation11], 0
      %s80 = sshll.u32 %s5, 4
      %s81 = int_to_ptr.hbm [resolvable:$true] %s80
      %s82 = sshll.u32 [#allocation10], 4
      %s83 = int_to_ptr.vmem [resolvable:$true] %s82
      %85 = dma.hbm_to_vmem [thread:$0]  %s81, 64, %s83, [#allocation11]
    $region25: #{tpu_custom_call.1} parent=1 // pred_fallthru
      _
    // Predicated region
    $region26: #{tpu_custom_call.1} parent=1 // pred_check
      _
    $region27: #{tpu_custom_call.1} parent=1 // pred_check_branch
      %87 = sbr.rel (0) target = $region29
    $region28: #{tpu_custom_call.1} parent=1 // pred_region
      _
    $region29: #{tpu_custom_call.1} parent=1 // pred_fallthru
      _
    // Predicated region
    $region30: #{tpu_custom_call.1} parent=1 // pred_check
      _
    $region31: #{tpu_custom_call.1} parent=1 // pred_check_branch
      %89 = sbr.rel (0) target = $region33
    $region32: #{tpu_custom_call.1} parent=1 // pred_region
      %91 = dma.done [#allocation3], 128
    $region33: #{tpu_custom_call.1} parent=1 // pred_fallthru
      _
    // Predicated region
    $region34: #{tpu_custom_call.1} parent=1 // pred_check
      _
    $region35: #{tpu_custom_call.1} parent=1 // pred_check_branch
      %93 = sbr.rel (0) target = $region37
    $region36: #{tpu_custom_call.1} parent=1 // pred_region
      %95 = dma.done [#allocation5], 512
    $region37: #{tpu_custom_call.1} parent=1 // pred_fallthru
      _
    // Predicated region
    $region38: #{tpu_custom_call.1} parent=1 // pred_check
      _
    $region39: #{tpu_custom_call.1} parent=1 // pred_check_branch
      %97 = sbr.rel (0) target = $region41
    $region40: #{tpu_custom_call.1} parent=1 // pred_region
      %99 = dma.done [#allocation5], 64
    $region41: #{tpu_custom_call.1} parent=1 // pred_fallthru
      _
    // Predicated region
    $region42: #{tpu_custom_call.1} parent=1 // pred_check
      _
    $region43: #{tpu_custom_call.1} parent=1 // pred_check_branch
      %101 = sbr.rel (0) target = $region45
    $region44: #{tpu_custom_call.1} parent=1 // pred_region
      %103 = dma.done [#allocation8], 8192
    $region45: #{tpu_custom_call.1} parent=1 // pred_fallthru
      _
    // Predicated region
    $region46: #{tpu_custom_call.1} parent=1 // pred_check
      _
    $region47: #{tpu_custom_call.1} parent=1 // pred_check_branch
      %105 = sbr.rel (0) target = $region49
    $region48: #{tpu_custom_call.1} parent=1 // pred_region
      %107 = dma.done [#allocation8], 64
    $region49: #{tpu_custom_call.1} parent=1 // pred_fallthru
      _
    // Predicated region
    $region50: #{tpu_custom_call.1} parent=1 // pred_check
      _
    $region51: #{tpu_custom_call.1} parent=1 // pred_check_branch
      %109 = sbr.rel (0) target = $region53
    $region52: #{tpu_custom_call.1} parent=1 // pred_region
      %111 = dma.done [#allocation11], 64
    $region53: #{tpu_custom_call.1} parent=1 // pred_fallthru
      _
    %v113 = vld [vmem:[#allocation2] sm:$0xff]
    %v114 = vpack.c.bf16 %v113, %v113
    %v115 = vld [vmem:[#allocation4] sm:$0xff]
    %v116 = vld [vmem:[#allocation4 + $0x8] sm:$0xff]
    %v117 = vld [vmem:[#allocation4 + $0x10] sm:$0xff]
    %v118 = vld [vmem:[#allocation4 + $0x18] sm:$0xff]
    %v119 = vld [vmem:[#allocation6] sm:$0xf]
    %v121 = vperm.slane %v119, 0
    %v122 = vperm.slane %v119, 1
    %v123 = vperm.slane %v119, 2
    %v124 = vperm.slane %v119, 3
    %v133 = vunpack.c.l.b16 %v115
    %v134 = vunpack.c.h.b16 %v115
    %v135 = vunpack.c.l.b16 %v116
    %v136 = vunpack.c.h.b16 %v116
    %v137 = vunpack.c.l.b16 %v117
    %v138 = vunpack.c.h.b16 %v117
    %v139 = vunpack.c.l.b16 %v118
    %v140 = vunpack.c.h.b16 %v118
    %v141 = vpack.c.b16 %v137, %v133
    %v142 = vpack.c.b16 %v138, %v134
    %v143 = vpack.c.b16 %v139, %v135
    %v144 = vpack.c.b16 %v140, %v136
    %vm149 = vcmask 130048
    %v151 = vsel %vm149, %v114, 0
    %153 = vmatpush.bf16.msra.mxu0 0
    %154 = vmatpush.bf16.msra.mxu0 0
    %155 = vmatpush.bf16.msra.mxu0 0
    %156 = vmatpush.bf16.msra.mxu0 0
    %157 = vmatpush.bf16.msra.mxu0 0
    %158 = vmatpush.bf16.msra.mxu0 0
    %159 = vmatpush.bf16.msra.mxu0 0
    %160 = vmatpush.bf16.msra.mxu0 %v141
    %161 = vmatmul.bf16.gmra.mxu0 %v151
    %v162 = vpop.f32.mrf.mxu0
    %v163 = vadd.f32 %v121, %v162
    %v164 = vpop.f32.mrf.mxu0
    %165 = vdwg.mxu0
    %166 = vmatpush.bf16.msra.mxu0 0
    %167 = vmatpush.bf16.msra.mxu0 0
    %168 = vmatpush.bf16.msra.mxu0 0
    %169 = vmatpush.bf16.msra.mxu0 0
    %170 = vmatpush.bf16.msra.mxu0 0
    %171 = vmatpush.bf16.msra.mxu0 0
    %172 = vmatpush.bf16.msra.mxu0 0
    %173 = vmatpush.bf16.msra.mxu0 %v142
    %174 = vmatmul.bf16.gmra.mxu0 %v151
    %v175 = vpop.f32.mrf.mxu0
    %v176 = vadd.f32 %v122, %v175
    %v177 = vpop.f32.mrf.mxu0
    %178 = vdwg.mxu0
    %179 = vmatpush.bf16.msra.mxu0 0
    %180 = vmatpush.bf16.msra.mxu0 0
    %181 = vmatpush.bf16.msra.mxu0 0
    %182 = vmatpush.bf16.msra.mxu0 0
    %183 = vmatpush.bf16.msra.mxu0 0
    %184 = vmatpush.bf16.msra.mxu0 0
    %185 = vmatpush.bf16.msra.mxu0 0
    %186 = vmatpush.bf16.msra.mxu0 %v143
    %187 = vmatmul.bf16.gmra.mxu0 %v151
    %v188 = vpop.f32.mrf.mxu0
    %v189 = vadd.f32 %v123, %v188
    %v190 = vpop.f32.mrf.mxu0
    %191 = vdwg.mxu0
    %192 = vmatpush.bf16.msra.mxu0 0
    %193 = vmatpush.bf16.msra.mxu0 0
    %194 = vmatpush.bf16.msra.mxu0 0
    %195 = vmatpush.bf16.msra.mxu0 0
    %196 = vmatpush.bf16.msra.mxu0 0
    %197 = vmatpush.bf16.msra.mxu0 0
    %198 = vmatpush.bf16.msra.mxu0 0
    %199 = vmatpush.bf16.msra.mxu0 %v144
    %200 = vmatmul.bf16.gmra.mxu0 %v151
    %v201 = vpop.f32.mrf.mxu0
    %v202 = vadd.f32 %v124, %v201
    %v203 = vpop.f32.mrf.mxu0
    %204 = vdwg.mxu0
    %v205 = vmax.f32 %v163, 0.0
    %v206 = vmax.f32 %v176, 0.0
    %v207 = vmax.f32 %v189, 0.0
    %v208 = vmax.f32 %v202, 0.0
    %v209 = vpack.c.bf16 %v207, %v205
    %v210 = vpack.c.bf16 %v208, %v206
    %v211 = vld [vmem:[#allocation7] sm:$0xff]
    %v212 = vld [vmem:[#allocation7 + $0x8] sm:$0xff]
    %v213 = vld [vmem:[#allocation7 + $0x10] sm:$0xff]
    %v214 = vld [vmem:[#allocation7 + $0x18] sm:$0xff]
    %v215 = vld [vmem:[#allocation7 + $0x20] sm:$0xff]
    %v216 = vld [vmem:[#allocation7 + $0x28] sm:$0xff]
    %v217 = vld [vmem:[#allocation7 + $0x30] sm:$0xff]
    %v218 = vld [vmem:[#allocation7 + $0x38] sm:$0xff]
    %v219 = vld [vmem:[#allocation7 + $0x40] sm:$0xff]
    %v220 = vld [vmem:[#allocation7 + $0x48] sm:$0xff]
    %v221 = vld [vmem:[#allocation7 + $0x50] sm:$0xff]
    %v222 = vld [vmem:[#allocation7 + $0x58] sm:$0xff]
    %v223 = vld [vmem:[#allocation7 + $0x60] sm:$0xff]
    %v224 = vld [vmem:[#allocation7 + $0x68] sm:$0xff]
    %v225 = vld [vmem:[#allocation7 + $0x70] sm:$0xff]
    %v226 = vld [vmem:[#allocation7 + $0x78] sm:$0xff]
    %v227 = vld [vmem:[#allocation7 + $0x80] sm:$0xff]
    %v228 = vld [vmem:[#allocation7 + $0x88] sm:$0xff]
    %v229 = vld [vmem:[#allocation7 + $0x90] sm:$0xff]
    %v230 = vld [vmem:[#allocation7 + $0x98] sm:$0xff]
    %v231 = vld [vmem:[#allocation7 + $0xa0] sm:$0xff]
    %v232 = vld [vmem:[#allocation7 + $0xa8] sm:$0xff]
    %v233 = vld [vmem:[#allocation7 + $0xb0] sm:$0xff]
    %v234 = vld [vmem:[#allocation7 + $0xb8] sm:$0xff]
    %v235 = vld [vmem:[#allocation7 + $0xc0] sm:$0xff]
    %v236 = vld [vmem:[#allocation7 + $0xc8] sm:$0xff]
    %v237 = vld [vmem:[#allocation7 + $0xd0] sm:$0xff]
    %v238 = vld [vmem:[#allocation7 + $0xd8] sm:$0xff]
    %v239 = vld [vmem:[#allocation7 + $0xe0] sm:$0xff]
    %v240 = vld [vmem:[#allocation7 + $0xe8] sm:$0xff]
    %v241 = vld [vmem:[#allocation7 + $0xf0] sm:$0xff]
    %v242 = vld [vmem:[#allocation7 + $0xf8] sm:$0xff]
    %v243 = vld [vmem:[#allocation7 + $0x100] sm:$0xff]
    %v244 = vld [vmem:[#allocation7 + $0x108] sm:$0xff]
    %v245 = vld [vmem:[#allocation7 + $0x110] sm:$0xff]
    %v246 = vld [vmem:[#allocation7 + $0x118] sm:$0xff]
    %v247 = vld [vmem:[#allocation7 + $0x120] sm:$0xff]
    %v248 = vld [vmem:[#allocation7 + $0x128] sm:$0xff]
    %v249 = vld [vmem:[#allocation7 + $0x130] sm:$0xff]
    %v250 = vld [vmem:[#allocation7 + $0x138] sm:$0xff]
    %v251 = vld [vmem:[#allocation7 + $0x140] sm:$0xff]
    %v252 = vld [vmem:[#allocation7 + $0x148] sm:$0xff]
    %v253 = vld [vmem:[#allocation7 + $0x150] sm:$0xff]
    %v254 = vld [vmem:[#allocation7 + $0x158] sm:$0xff]
    %v255 = vld [vmem:[#allocation7 + $0x160] sm:$0xff]
    %v256 = vld [vmem:[#allocation7 + $0x168] sm:$0xff]
    %v257 = vld [vmem:[#allocation7 + $0x170] sm:$0xff]
    %v258 = vld [vmem:[#allocation7 + $0x178] sm:$0xff]
    %v259 = vld [vmem:[#allocation7 + $0x180] sm:$0xff]
    %v260 = vld [vmem:[#allocation7 + $0x188] sm:$0xff]
    %v261 = vld [vmem:[#allocation7 + $0x190] sm:$0xff]
    %v262 = vld [vmem:[#allocation7 + $0x198] sm:$0xff]
    %v263 = vld [vmem:[#allocation7 + $0x1a0] sm:$0xff]
    %v264 = vld [vmem:[#allocation7 + $0x1a8] sm:$0xff]
    %v265 = vld [vmem:[#allocation7 + $0x1b0] sm:$0xff]
    %v266 = vld [vmem:[#allocation7 + $0x1b8] sm:$0xff]
    %v267 = vld [vmem:[#allocation7 + $0x1c0] sm:$0xff]
    %v268 = vld [vmem:[#allocation7 + $0x1c8] sm:$0xff]
    %v269 = vld [vmem:[#allocation7 + $0x1d0] sm:$0xff]
    %v270 = vld [vmem:[#allocation7 + $0x1d8] sm:$0xff]
    %v271 = vld [vmem:[#allocation7 + $0x1e0] sm:$0xff]
    %v272 = vld [vmem:[#allocation7 + $0x1e8] sm:$0xff]
    %v273 = vld [vmem:[#allocation7 + $0x1f0] sm:$0xff]
    %v274 = vld [vmem:[#allocation7 + $0x1f8] sm:$0xff]
    %v275 = vld [vmem:[#allocation9] sm:$0xf]
    %v277 = vperm.slane %v275, 0
    %v278 = vperm.slane %v275, 1
    %v279 = vperm.slane %v275, 2
    %v280 = vperm.slane %v275, 3
    %v349 = vunpack.c.l.b16 %v211
    %v350 = vunpack.c.h.b16 %v211
    %v351 = vunpack.c.l.b16 %v212
    %v352 = vunpack.c.h.b16 %v212
    %v353 = vunpack.c.l.b16 %v213
    %v354 = vunpack.c.h.b16 %v213
    %v355 = vunpack.c.l.b16 %v214
    %v356 = vunpack.c.h.b16 %v214
    %v357 = vunpack.c.l.b16 %v215
    %v358 = vunpack.c.h.b16 %v215
    %v359 = vunpack.c.l.b16 %v216
    %v360 = vunpack.c.h.b16 %v216
    %v361 = vunpack.c.l.b16 %v217
    %v362 = vunpack.c.h.b16 %v217
    %v363 = vunpack.c.l.b16 %v218
    %v364 = vunpack.c.h.b16 %v218
    %v365 = vunpack.c.l.b16 %v219
    %v366 = vunpack.c.h.b16 %v219
    %v367 = vunpack.c.l.b16 %v220
    %v368 = vunpack.c.h.b16 %v220
    %v369 = vunpack.c.l.b16 %v221
    %v370 = vunpack.c.h.b16 %v221
    %v371 = vunpack.c.l.b16 %v222
    %v372 = vunpack.c.h.b16 %v222
    %v373 = vunpack.c.l.b16 %v223
    %v374 = vunpack.c.h.b16 %v223
    %v375 = vunpack.c.l.b16 %v224
    %v376 = vunpack.c.h.b16 %v224
    %v377 = vunpack.c.l.b16 %v225
    %v378 = vunpack.c.h.b16 %v225
    %v379 = vunpack.c.l.b16 %v226
    %v380 = vunpack.c.h.b16 %v226
    %v381 = vunpack.c.l.b16 %v227
    %v382 = vunpack.c.h.b16 %v227
    %v383 = vunpack.c.l.b16 %v228
    %v384 = vunpack.c.h.b16 %v228
    %v385 = vunpack.c.l.b16 %v229
    %v386 = vunpack.c.h.b16 %v229
    %v387 = vunpack.c.l.b16 %v230
    %v388 = vunpack.c.h.b16 %v230
    %v389 = vunpack.c.l.b16 %v231
    %v390 = vunpack.c.h.b16 %v231
    %v391 = vunpack.c.l.b16 %v232
    %v392 = vunpack.c.h.b16 %v232
    %v393 = vunpack.c.l.b16 %v233
    %v394 = vunpack.c.h.b16 %v233
    %v395 = vunpack.c.l.b16 %v234
    %v396 = vunpack.c.h.b16 %v234
    %v397 = vunpack.c.l.b16 %v235
    %v398 = vunpack.c.h.b16 %v235
    %v399 = vunpack.c.l.b16 %v236
    %v400 = vunpack.c.h.b16 %v236
    %v401 = vunpack.c.l.b16 %v237
    %v402 = vunpack.c.h.b16 %v237
    %v403 = vunpack.c.l.b16 %v238
    %v404 = vunpack.c.h.b16 %v238
    %v405 = vunpack.c.l.b16 %v239
    %v406 = vunpack.c.h.b16 %v239
    %v407 = vunpack.c.l.b16 %v240
    %v408 = vunpack.c.h.b16 %v240
    %v409 = vunpack.c.l.b16 %v241
    %v410 = vunpack.c.h.b16 %v241
    %v411 = vunpack.c.l.b16 %v242
    %v412 = vunpack.c.h.b16 %v242
    %v413 = vunpack.c.l.b16 %v243
    %v414 = vunpack.c.h.b16 %v243
    %v415 = vunpack.c.l.b16 %v244
    %v416 = vunpack.c.h.b16 %v244
    %v417 = vunpack.c.l.b16 %v245
    %v418 = vunpack.c.h.b16 %v245
    %v419 = vunpack.c.l.b16 %v246
    %v420 = vunpack.c.h.b16 %v246
    %v421 = vunpack.c.l.b16 %v247
    %v422 = vunpack.c.h.b16 %v247
    %v423 = vunpack.c.l.b16 %v248
    %v424 = vunpack.c.h.b16 %v248
    %v425 = vunpack.c.l.b16 %v249
    %v426 = vunpack.c.h.b16 %v249
    %v427 = vunpack.c.l.b16 %v250
    %v428 = vunpack.c.h.b16 %v250
    %v429 = vunpack.c.l.b16 %v251
    %v430 = vunpack.c.h.b16 %v251
    %v431 = vunpack.c.l.b16 %v252
    %v432 = vunpack.c.h.b16 %v252
    %v433 = vunpack.c.l.b16 %v253
    %v434 = vunpack.c.h.b16 %v253
    %v435 = vunpack.c.l.b16 %v254
    %v436 = vunpack.c.h.b16 %v254
    %v437 = vunpack.c.l.b16 %v255
    %v438 = vunpack.c.h.b16 %v255
    %v439 = vunpack.c.l.b16 %v256
    %v440 = vunpack.c.h.b16 %v256
    %v441 = vunpack.c.l.b16 %v257
    %v442 = vunpack.c.h.b16 %v257
    %v443 = vunpack.c.l.b16 %v258
    %v444 = vunpack.c.h.b16 %v258
    %v445 = vunpack.c.l.b16 %v259
    %v446 = vunpack.c.h.b16 %v259
    %v447 = vunpack.c.l.b16 %v260
    %v448 = vunpack.c.h.b16 %v260
    %v449 = vunpack.c.l.b16 %v261
    %v450 = vunpack.c.h.b16 %v261
    %v451 = vunpack.c.l.b16 %v262
    %v452 = vunpack.c.h.b16 %v262
    %v453 = vunpack.c.l.b16 %v263
    %v454 = vunpack.c.h.b16 %v263
    %v455 = vunpack.c.l.b16 %v264
    %v456 = vunpack.c.h.b16 %v264
    %v457 = vunpack.c.l.b16 %v265
    %v458 = vunpack.c.h.b16 %v265
    %v459 = vunpack.c.l.b16 %v266
    %v460 = vunpack.c.h.b16 %v266
    %v461 = vunpack.c.l.b16 %v267
    %v462 = vunpack.c.h.b16 %v267
    %v463 = vunpack.c.l.b16 %v268
    %v464 = vunpack.c.h.b16 %v268
    %v465 = vunpack.c.l.b16 %v269
    %v466 = vunpack.c.h.b16 %v269
    %v467 = vunpack.c.l.b16 %v270
    %v468 = vunpack.c.h.b16 %v270
    %v469 = vunpack.c.l.b16 %v271
    %v470 = vunpack.c.h.b16 %v271
    %v471 = vunpack.c.l.b16 %v272
    %v472 = vunpack.c.h.b16 %v272
    %v473 = vunpack.c.l.b16 %v273
    %v474 = vunpack.c.h.b16 %v273
    %v475 = vunpack.c.l.b16 %v274
    %v476 = vunpack.c.h.b16 %v274
    %v477 = vpack.c.b16 %v353, %v349
    %v478 = vpack.c.b16 %v354, %v350
    %v479 = vpack.c.b16 %v355, %v351
    %v480 = vpack.c.b16 %v356, %v352
    %v481 = vpack.c.b16 %v361, %v357
    %v482 = vpack.c.b16 %v362, %v358
    %v483 = vpack.c.b16 %v363, %v359
    %v484 = vpack.c.b16 %v364, %v360
    %v485 = vpack.c.b16 %v369, %v365
    %v486 = vpack.c.b16 %v370, %v366
    %v487 = vpack.c.b16 %v371, %v367
    %v488 = vpack.c.b16 %v372, %v368
    %v489 = vpack.c.b16 %v377, %v373
    %v490 = vpack.c.b16 %v378, %v374
    %v491 = vpack.c.b16 %v379, %v375
    %v492 = vpack.c.b16 %v380, %v376
    %v493 = vpack.c.b16 %v385, %v381
    %v494 = vpack.c.b16 %v386, %v382
    %v495 = vpack.c.b16 %v387, %v383
    %v496 = vpack.c.b16 %v388, %v384
    %v497 = vpack.c.b16 %v393, %v389
    %v498 = vpack.c.b16 %v394, %v390
    %v499 = vpack.c.b16 %v395, %v391
    %v500 = vpack.c.b16 %v396, %v392
    %v501 = vpack.c.b16 %v401, %v397
    %v502 = vpack.c.b16 %v402, %v398
    %v503 = vpack.c.b16 %v403, %v399
    %v504 = vpack.c.b16 %v404, %v400
    %v505 = vpack.c.b16 %v409, %v405
    %v506 = vpack.c.b16 %v410, %v406
    %v507 = vpack.c.b16 %v411, %v407
    %v508 = vpack.c.b16 %v412, %v408
    %v509 = vpack.c.b16 %v417, %v413
    %v510 = vpack.c.b16 %v418, %v414
    %v511 = vpack.c.b16 %v419, %v415
    %v512 = vpack.c.b16 %v420, %v416
    %v513 = vpack.c.b16 %v425, %v421
    %v514 = vpack.c.b16 %v426, %v422
    %v515 = vpack.c.b16 %v427, %v423
    %v516 = vpack.c.b16 %v428, %v424
    %v517 = vpack.c.b16 %v433, %v429
    %v518 = vpack.c.b16 %v434, %v430
    %v519 = vpack.c.b16 %v435, %v431
    %v520 = vpack.c.b16 %v436, %v432
    %v521 = vpack.c.b16 %v441, %v437
    %v522 = vpack.c.b16 %v442, %v438
    %v523 = vpack.c.b16 %v443, %v439
    %v524 = vpack.c.b16 %v444, %v440
    %v525 = vpack.c.b16 %v449, %v445
    %v526 = vpack.c.b16 %v450, %v446
    %v527 = vpack.c.b16 %v451, %v447
    %v528 = vpack.c.b16 %v452, %v448
    %v529 = vpack.c.b16 %v457, %v453
    %v530 = vpack.c.b16 %v458, %v454
    %v531 = vpack.c.b16 %v459, %v455
    %v532 = vpack.c.b16 %v460, %v456
    %v533 = vpack.c.b16 %v465, %v461
    %v534 = vpack.c.b16 %v466, %v462
    %v535 = vpack.c.b16 %v467, %v463
    %v536 = vpack.c.b16 %v468, %v464
    %v537 = vpack.c.b16 %v473, %v469
    %v538 = vpack.c.b16 %v474, %v470
    %v539 = vpack.c.b16 %v475, %v471
    %v540 = vpack.c.b16 %v476, %v472
    %605 = vmatpush.bf16.msra.mxu0 %v505
    %606 = vmatpush.bf16.msra.mxu0 %v501
    %607 = vmatpush.bf16.msra.mxu0 %v497
    %608 = vmatpush.bf16.msra.mxu0 %v493
    %609 = vmatpush.bf16.msra.mxu0 %v489
    %610 = vmatpush.bf16.msra.mxu0 %v485
    %611 = vmatpush.bf16.msra.mxu0 %v481
    %612 = vmatpush.bf16.msra.mxu0 %v477
    %613 = vmatmul.bf16.gmra.mxu0 %v209
    %v614 = vpop.f32.mrf.mxu0
    %v615 = vadd.f32 %v277, %v614
    %v616 = vpop.f32.mrf.mxu0
    %617 = vdwg.mxu0
    %618 = vmatpush.bf16.msra.mxu0 %v537
    %619 = vmatpush.bf16.msra.mxu0 %v533
    %620 = vmatpush.bf16.msra.mxu0 %v529
    %621 = vmatpush.bf16.msra.mxu0 %v525
    %622 = vmatpush.bf16.msra.mxu0 %v521
    %623 = vmatpush.bf16.msra.mxu0 %v517
    %624 = vmatpush.bf16.msra.mxu0 %v513
    %625 = vmatpush.bf16.msra.mxu0 %v509
    %626 = vmatmul.bf16.gmra.mxu0 %v210
    %v627 = vpop.f32.mrf.mxu0
    %v628 = vadd.f32 %v615, %v627
    %v629 = vpop.f32.mrf.mxu0
    %630 = vdwg.mxu0
    %631 = vmatpush.bf16.msra.mxu0 %v506
    %632 = vmatpush.bf16.msra.mxu0 %v502
    %633 = vmatpush.bf16.msra.mxu0 %v498
    %634 = vmatpush.bf16.msra.mxu0 %v494
    %635 = vmatpush.bf16.msra.mxu0 %v490
    %636 = vmatpush.bf16.msra.mxu0 %v486
    %637 = vmatpush.bf16.msra.mxu0 %v482
    %638 = vmatpush.bf16.msra.mxu0 %v478
    %639 = vmatmul.bf16.gmra.mxu0 %v209
    %v640 = vpop.f32.mrf.mxu0
    %v641 = vadd.f32 %v278, %v640
    %v642 = vpop.f32.mrf.mxu0
    %643 = vdwg.mxu0
    %644 = vmatpush.bf16.msra.mxu0 %v538
    %645 = vmatpush.bf16.msra.mxu0 %v534
    %646 = vmatpush.bf16.msra.mxu0 %v530
    %647 = vmatpush.bf16.msra.mxu0 %v526
    %648 = vmatpush.bf16.msra.mxu0 %v522
    %649 = vmatpush.bf16.msra.mxu0 %v518
    %650 = vmatpush.bf16.msra.mxu0 %v514
    %651 = vmatpush.bf16.msra.mxu0 %v510
    %652 = vmatmul.bf16.gmra.mxu0 %v210
    %v653 = vpop.f32.mrf.mxu0
    %v654 = vadd.f32 %v641, %v653
    %v655 = vpop.f32.mrf.mxu0
    %656 = vdwg.mxu0
    %657 = vmatpush.bf16.msra.mxu0 %v507
    %658 = vmatpush.bf16.msra.mxu0 %v503
    %659 = vmatpush.bf16.msra.mxu0 %v499
    %660 = vmatpush.bf16.msra.mxu0 %v495
    %661 = vmatpush.bf16.msra.mxu0 %v491
    %662 = vmatpush.bf16.msra.mxu0 %v487
    %663 = vmatpush.bf16.msra.mxu0 %v483
    %664 = vmatpush.bf16.msra.mxu0 %v479
    %665 = vmatmul.bf16.gmra.mxu0 %v209
    %v666 = vpop.f32.mrf.mxu0
    %v667 = vpop.f32.mrf.mxu0
    %v668 = vadd.f32 %v279, %v667
    %669 = vdwg.mxu0
    %670 = vmatpush.bf16.msra.mxu0 %v539
    %671 = vmatpush.bf16.msra.mxu0 %v535
    %672 = vmatpush.bf16.msra.mxu0 %v531
    %673 = vmatpush.bf16.msra.mxu0 %v527
    %674 = vmatpush.bf16.msra.mxu0 %v523
    %675 = vmatpush.bf16.msra.mxu0 %v519
    %676 = vmatpush.bf16.msra.mxu0 %v515
    %677 = vmatpush.bf16.msra.mxu0 %v511
    %678 = vmatmul.bf16.gmra.mxu0 %v210
    %v679 = vpop.f32.mrf.mxu0
    %v680 = vpop.f32.mrf.mxu0
    %v681 = vadd.f32 %v668, %v680
    %682 = vdwg.mxu0
    %683 = vmatpush.bf16.msra.mxu0 %v508
    %684 = vmatpush.bf16.msra.mxu0 %v504
    %685 = vmatpush.bf16.msra.mxu0 %v500
    %686 = vmatpush.bf16.msra.mxu0 %v496
    %687 = vmatpush.bf16.msra.mxu0 %v492
    %688 = vmatpush.bf16.msra.mxu0 %v488
    %689 = vmatpush.bf16.msra.mxu0 %v484
    %690 = vmatpush.bf16.msra.mxu0 %v480
    %691 = vmatmul.bf16.gmra.mxu0 %v209
    %v692 = vpop.f32.mrf.mxu0
    %v693 = vpop.f32.mrf.mxu0
    %v694 = vadd.f32 %v280, %v693
    %695 = vdwg.mxu0
    %696 = vmatpush.bf16.msra.mxu0 %v540
    %697 = vmatpush.bf16.msra.mxu0 %v536
    %698 = vmatpush.bf16.msra.mxu0 %v532
    %699 = vmatpush.bf16.msra.mxu0 %v528
    %700 = vmatpush.bf16.msra.mxu0 %v524
    %701 = vmatpush.bf16.msra.mxu0 %v520
    %702 = vmatpush.bf16.msra.mxu0 %v516
    %703 = vmatpush.bf16.msra.mxu0 %v512
    %704 = vmatmul.bf16.gmra.mxu0 %v210
    %v705 = vpop.f32.mrf.mxu0
    %v706 = vpop.f32.mrf.mxu0
    %v707 = vadd.f32 %v694, %v706
    %708 = vdwg.mxu0
    %v709 = vmax.f32 %v628, 0.0
    %v710 = vmax.f32 %v654, 0.0
    %v711 = vmax.f32 %v681, 0.0
    %v712 = vmax.f32 %v707, 0.0
    %v713 = vld [vmem:[#allocation10] sm:$0xf]
    %v715 = vrot.slane %v713, 1
    %v716 = vrot.slane %v713, 2
    %v717 = vrot.slane %v713, 3
    %vm718 = vcmask 1040384
    %v719 = vsel %vm718, %v713, %v715
    %vm720 = vcmask 1042434
    %v721 = vsel %vm720, %v716, %v717
    %vm722 = vcmask 1041408
    %v723 = vsel %vm722, %v719, %v721
    %vm724 = vcmask 1041409
    %v725 = vsel %vm724, %v713, %v715
    %vm726 = vcmask 1043459
    %v727 = vsel %vm726, %v716, %v717
    %vm728 = vcmask 1042433
    %v729 = vsel %vm728, %v725, %v727
    %v730 = vrot.slane %v729, 1
    %v731 = vperm.slane %v723, 0
    %v732 = vperm.slane %v723, 1
    %v733 = vperm.slane %v730, 0
    %v734 = vperm.slane %v730, 1
    %v739 = vmul.f32 %v709, %v731
    %v740 = vmul.f32 %v710, %v732
    %v741 = vmul.f32 %v711, %v733
    %v742 = vmul.f32 %v712, %v734
    %v743 = vadd.f32 %v739, %v740
    %744 = vadd.xlane.f32.xlu0 %v743
    %v745 = vpop.xlane.xlu0 %744
    %v746 = vadd.f32 %v741, %v742
    %747 = vadd.xlane.f32.xlu0 %v746
    %v748 = vpop.xlane.xlu0 %747
    %v749 = vld [vmem:[%s6] sm:$0x3]
    %v751 = vrot.slane %v749, 1
    %v752 = vperm.slane %v749, 0
    %v753 = vperm.slane %v751, 0
    %v756 = vadd.f32 %v745, %v752
    %v757 = vadd.f32 %v748, %v753
    %vm758 = vcmask 7168
    %759 = vst.msk [vmem:[%s7] sm:$0xff] %vm758, %v756
    %760 = vst.msk [vmem:[%s7 + $0x8] sm:$0xff] %vm758, %v757
    // Predicated region
    $region54: #{tpu_custom_call.1} parent=1 // pred_check
      _
    $region55: #{tpu_custom_call.1} parent=1 // pred_check_branch
      %762 = sbr.rel (0) target = $region57
    $region56: #{tpu_custom_call.1} parent=1 // pred_region
      _
    $region57: #{tpu_custom_call.1} parent=1 // pred_fallthru
      _
    // Predicated region
    $region58: #{tpu_custom_call.1} parent=1 // pred_check
      _
    $region59: #{tpu_custom_call.1} parent=1 // pred_check_branch
      %764 = sbr.rel (0) target = $region61
    $region60: #{tpu_custom_call.1} parent=1 // pred_region
      _
    $region61: #{tpu_custom_call.1} parent=1 // pred_fallthru
      _
    %765 = vsyncpa [#allocation3], 1
    %766 = vsyncpa [#allocation5], 1
    %767 = vsyncpa [#allocation8], 1
    %768 = vsyncpa [#allocation11], 1

</llo_original>
